<compile_context>
chip_gen: v7x
topology: tpu7x:2x2x1
jax: 0.10.0
libtpu: 0.0.40
codegen_flags: <defaults>
</compile_context>

<pallas_src>
import math
from functools import partial

import jax
import jax.numpy as jnp
from jax.experimental import pallas as pl
from jax.experimental.pallas import tpu as pltpu

_LANE = 128
_VMEM_BLOCK_BUDGET = 24 * 1024 * 1024   # budget for double-buffered in+out blocks
_VMEM_LIMIT_BYTES = 32 * 1024 * 1024    # scoped VMEM request (safe on v5e/v6e/v7x)
_MEGACORE_SPLIT_MIN_ROWS = 128          # only force a 2-step grid above this many rows


def _sinusoidal_kernel(time_ref, freq_ref, out_ref, *, width: int):
    """One batch tile of sinusoidal embeddings.

    time_ref: (tb, 1) or (tb, width)  f32 VMEM -- time steps (pre-expanded when packed)
    freq_ref: (1, width)              f32 VMEM -- resident frequency row
    out_ref : (tb, 2*width)                    -- [sin | cos]; stores at lane offsets
                                                  0 and `width` (multiple of 128 on the
                                                  packed / aligned paths -> unmasked vst)
    """
    args = time_ref[...] * freq_ref[...]                    # (tb, width) via broadcast
    out_ref[:, :width] = jnp.sin(args).astype(out_ref.dtype)
    out_ref[:, width:] = jnp.cos(args).astype(out_ref.dtype)


def _pick_tile_rows(rows: int, row_bytes: int) -> int:
    """Largest multiple-of-8 row tile fitting the VMEM budget; full `rows` when it
    all fits; split into >= 2 grid steps for large batches (v7x megacore)."""
    tb_budget = max(8, (_VMEM_BLOCK_BUDGET // row_bytes) // 8 * 8)
    if rows <= tb_budget:
        if rows >= _MEGACORE_SPLIT_MIN_ROWS:
            half_rows = -(-rows // 2)           # ceil(rows / 2)
            return -(-half_rows // 8) * 8       # round up to a multiple of 8
        return rows
    return tb_budget


def sinusoidal_positional_embedding(time: jax.Array, dim: int,
                                    *, out_dtype=jnp.float32) -> jax.Array:
    """Pallas equivalent of SinusoidalPositionalEmbedding.forward.

    Args:
      time: (B,) array of time steps (any real/int dtype).
      dim:  embedding dimension (>= 4).
      out_dtype: output dtype (float32 matches the PyTorch module; bf16 halves
        HBM writeback when the consumer accepts it).
    Returns:
      (B, dim) embeddings: [sin(t*f), cos(t*f), (0 pad if odd)].
    """
    assert dim >= 4, "dim must be >= 4 (dim==3 gives half_dim-1 == 0)"
    half = dim // 2
    b = time.shape[0]
    out_isz = jnp.dtype(out_dtype).itemsize

    # Hoisted frequency row (computed once in plain JAX, resident in VMEM).
    scale = math.log(10000.0) / (half - 1)
    freqs = jnp.exp(jnp.arange(half, dtype=jnp.float32) * (-scale))   # (half,)

    # Lane-misaligned small `half`: pack k batch rows per kernel row so the
    # trig store width k*half is a multiple of 128 lanes (unmasked vst).
    pack = 1
    if half % _LANE != 0 and half < _LANE:
        k = _LANE // math.gcd(half, _LANE)
        if b % k == 0 and k * half <= 4 * _LANE:
            pack = k

    if pack > 1:
        width = pack * half
        rows = b // pack
        # time_in[i, j*half + m] = time[i*pack + j];  freq_in[0, j*half + m] = f[m]
        time_in = jnp.repeat(time.astype(jnp.float32).reshape(rows, pack),
                             half, axis=1)                       # (rows, width)
        freq_in = jnp.tile(freqs, pack).reshape(1, width)        # (1, width)
        in_width = width
    else:
        width = half
        rows = b
        time_in = time.astype(jnp.float32).reshape(rows, 1)      # (rows, 1)
        freq_in = freqs.reshape(1, width)                        # (1, width)
        in_width = 1

    # Double-buffered (input + output) bytes per kernel row -> VMEM-budgeted tile.
    row_bytes = 2 * (in_width * 4 + 2 * width * out_isz)
    tb = _pick_tile_rows(rows, row_bytes)
    grid = (pl.cdiv(rows, tb),)

    cost = pl.CostEstimate(
        flops=b * half,                       # the t*f outer-product multiplies
        transcendentals=2 * b * half,         # sin + cos
        bytes_accessed=rows * in_width * 4 + half * 4 + b * 2 * half * out_isz,
    )

    emb = pl.pallas_call(
        partial(_sinusoidal_kernel, width=width),
        out_shape=jax.ShapeDtypeStruct((rows, 2 * width), out_dtype),
        grid=grid,
        in_specs=[
            pl.BlockSpec((tb, in_width), lambda i: (i, 0)),      # time tile
            pl.BlockSpec((1, width), lambda i: (0, 0)),          # resident freq row
        ],
        out_specs=pl.BlockSpec((tb, 2 * width), lambda i: (i, 0)),
        compiler_params=pltpu.CompilerParams(
            dimension_semantics=("parallel",),
            vmem_limit_bytes=_VMEM_LIMIT_BYTES),
        cost_estimate=cost,
    )(time_in, freq_in)

    if pack > 1:
        # Un-pack: (rows, 2, pack, half) -> (rows, pack, 2, half) -> (b, 2*half).
        emb = emb.reshape(rows, 2, pack, half).transpose(0, 2, 1, 3)
        emb = emb.reshape(b, 2 * half)
    if dim % 2 == 1:
        emb = jnp.pad(emb, ((0, 0), (0, 1)))
    return emb


def _reference(time: jax.Array, dim: int) -> jax.Array:
    """Pure-JAX mirror of the PyTorch forward, for a sanity check."""
    half_dim = dim // 2
    emb = math.log(10000.0) / (half_dim - 1)
    emb = jnp.exp(jnp.arange(half_dim, dtype=jnp.float32) * -emb)
    emb = time.astype(jnp.float32)[:, None] * emb[None, :]
    emb = jnp.concatenate([jnp.sin(emb), jnp.cos(emb)], axis=-1)
    if dim % 2 == 1:
        emb = jnp.pad(emb, ((0, 0), (0, 1)))
    return emb


if __name__ == "__main__":
    key = jax.random.PRNGKey(0)
    batch = 8
    dim = 32

    # Deterministic example "time steps" (e.g. diffusion timesteps).
    time = jax.random.uniform(key, (batch,), dtype=jnp.float32,
                              minval=0.0, maxval=1000.0)

    # Main example (dim=32 -> packed, fully lane-aligned stores).
    out = sinusoidal_positional_embedding(time, dim)
    out = jax.block_until_ready(out)
    ref = _reference(time, dim)
    assert out.shape == (batch, dim), out.shape
    assert out.dtype == jnp.float32, out.dtype
    assert jnp.allclose(out, ref, atol=2e-5, rtol=1e-5), "mismatch vs reference"

    # Unpacked / lane-aligned path (half % 128 == 0).
    time2 = jax.random.uniform(jax.random.PRNGKey(1), (16,), dtype=jnp.float32,
                               minval=0.0, maxval=1000.0)
    out2 = jax.block_until_ready(sinusoidal_positional_embedding(time2, 256))
    assert out2.shape == (16, 256)
    assert jnp.allclose(out2, _reference(time2, 256), atol=2e-5, rtol=1e-5)

    # Odd dim (zero pad handled in the wrapper).
    out3 = jax.block_until_ready(sinusoidal_positional_embedding(time, 33))
    assert out3.shape == (batch, 33)
    assert jnp.allclose(out3, _reference(time, 33), atol=2e-5, rtol=1e-5)

    print("KERNEL_OK")
</pallas_src>

<mosaic_0001>
module attributes {stable_mosaic.version = 11 : i64} {
  func.func @_sinusoidal_kernel(%arg0: i32, %arg1: memref<1x128xf32, #tpu.memory_space<vmem>>, %arg2: memref<1x128xf32, #tpu.memory_space<vmem>>, %arg3: memref<1x256xf32, #tpu.memory_space<vmem>>) attributes {dimension_semantics = [#tpu.dimension_semantics<parallel>], iteration_bounds = array<i64: 1>, scalar_prefetch = 0 : i64, scratch_operands = 0 : i64, tpu.core_type = #tpu.core_type<tc>, window_params = [{transform_indices = @transform_0, window_bounds = array<i64: 1, 128>}, {pipeline_mode = #tpu.pipeline_mode<synchronous>, transform_indices = @transform_1, window_bounds = array<i64: 1, 128>}, {transform_indices = @transform_2, window_bounds = array<i64: 1, 256>}]} {
    %c0 = arith.constant 0 : index
    %c0_0 = arith.constant 0 : index
    %0 = vector.load %arg1[%c0, %c0_0] : memref<1x128xf32, #tpu.memory_space<vmem>>, vector<1x128xf32>
    %c0_1 = arith.constant 0 : index
    %c0_2 = arith.constant 0 : index
    %1 = vector.load %arg2[%c0_1, %c0_2] : memref<1x128xf32, #tpu.memory_space<vmem>>, vector<1x128xf32>
    %2 = arith.mulf %0, %1 : vector<1x128xf32>
    %3 = math.sin %2 : vector<1x128xf32>
    %c0_3 = arith.constant 0 : index
    %c0_4 = arith.constant 0 : index
    %4 = vector.load %arg3[%c0_3, %c0_4] : memref<1x256xf32, #tpu.memory_space<vmem>>, vector<1x128xf32>
    tpu.vector_store %arg3[%c0_3, %c0_4], %3 {strides = array<i32>} : memref<1x256xf32, #tpu.memory_space<vmem>>, vector<1x128xf32>,
    %5 = math.cos %2 : vector<1x128xf32>
    %c0_5 = arith.constant 0 : index
    %c128 = arith.constant 128 : index
    %6 = vector.load %arg3[%c0_5, %c128] : memref<1x256xf32, #tpu.memory_space<vmem>>, vector<1x128xf32>
    tpu.vector_store %arg3[%c0_5, %c128], %5 {strides = array<i32>} : memref<1x256xf32, #tpu.memory_space<vmem>>, vector<1x128xf32>,
    return
  }
  func.func @transform_0(%arg0: i32) -> (i32, i32) {
    %c0_i32 = arith.constant 0 : i32
    %c0_i32_0 = arith.constant 0 : i32
    return %arg0, %c0_i32 : i32, i32
  }
  func.func @transform_1(%arg0: i32) -> (i32, i32) {
    %c0_i32 = arith.constant 0 : i32
    %c0_i32_0 = arith.constant 0 : i32
    %c0_i32_1 = arith.constant 0 : i32
    return %c0_i32, %c0_i32_0 : i32, i32
  }
  func.func @transform_2(%arg0: i32) -> (i32, i32) {
    %c0_i32 = arith.constant 0 : i32
    %c0_i32_0 = arith.constant 0 : i32
    return %arg0, %c0_i32 : i32, i32
  }
}

</mosaic_0001>

<llo_original>
// kernel: tpu_custom_call.1
$region0: #{tpu_custom_call.1}
  #allocation0 [shape = 'u32[]', space=smem, size = 0x4, offset = 0x4, fixed_abs, tag = 'smem constant byte address 0x4 - core index']
  #allocation1 [shape = 'u32[144,128]{1,0:T(1,128)}', space=vmem, size = 0x12000, scoped, tag = 'internal scratch']
  %s0 = inlined_call_operand.hbm [shape: f32[1,128], index: 0, kind: input, shape index: {}]
  %s1 = inlined_call_operand.vmem [shape: f32[1,128], index: 1, kind: input, shape index: {}]
  %s2 = inlined_call_operand.hbm [shape: f32[1,256], index: 2, kind: output, shape index: {}]
  %s3 = sld [smem:[#allocation0]]
  $region22: #{tpu_custom_call.1} parent=0
    _
  %s5 = ssub.s32 1, %s3
  %s6 = scalar_select 0, %s5, %s3
  $region1: #{tpu_custom_call.1} parent=0
    #allocation2 [shape = 'u8[512]{0}', space=vmem, size = 0x400, scoped, tag = 'input window, operand 0, single buffered']
    #allocation3 [shape = 's32[1]{0}', space=sflag, size = 0x4, scoped, tag = 'scoped memory for tpu_custom_call.1']
    #allocation4 [shape = 's32[1]{0}', space=sflag, size = 0x4, scoped, tag = 'scoped memory for tpu_custom_call.1']
    #allocation5 [shape = 'u8[1024]{0}', space=vmem, size = 0x400, scoped, tag = 'output window, operand 0, single buffered']
    %7 = vsyncpa [#allocation3], 0
    %8 = vsyncpa [#allocation4], 0
    // Predicated region
    $region2: #{tpu_custom_call.1} parent=1 // pred_check
      _
    $region3: #{tpu_custom_call.1} parent=1 // pred_check_branch
      %10 = sbr.rel (0) target = $region5
    $region4: #{tpu_custom_call.1} parent=1 // pred_region
      %s12 = ssub.s32 16, 16
      %13 = vsyncadd [#allocation3], %s12
      %s15 = sshll.u32 [#allocation2], 4
      %s16 = int_to_ptr.vmem [resolvable:$true] %s15
      %18 = dma.hbm_to_vmem [thread:$0]  %s0, 16, %s16, [#allocation3]
    $region5: #{tpu_custom_call.1} parent=1 // pred_fallthru
      _
    // Predicated region
    $region6: #{tpu_custom_call.1} parent=1 // pred_check
      _
    $region7: #{tpu_custom_call.1} parent=1 // pred_check_branch
      %20 = sbr.rel (0) target = $region9
    $region8: #{tpu_custom_call.1} parent=1 // pred_region
      _
    $region9: #{tpu_custom_call.1} parent=1 // pred_fallthru
      _
    // Predicated region
    $region10: #{tpu_custom_call.1} parent=1 // pred_check
      _
    $region11: #{tpu_custom_call.1} parent=1 // pred_check_branch
      %22 = sbr.rel (0) target = $region13
    $region12: #{tpu_custom_call.1} parent=1 // pred_region
      %23 = dma.done [#allocation3], 16
    $region13: #{tpu_custom_call.1} parent=1 // pred_fallthru
      _
    %v24 = vld [vmem:[#allocation2] sm:$0x1]
    %v25 = vld [vmem:[%s1] sm:$0x1]
    %v26 = vmul.f32 %v24, %v25
    %v27 = vand.u32 2147483647, %v26
    %vm28 = vcmp.le.f32.partialorder %v27, 0.7853982
    %vm29 = vcmp.lt.s32.totalorder %v26, 0
    %v30 = vand.u32 %v26, 2139095040
    %v31 = vshrl.u32 %v30, 23
    %v32 = vsub.s32 %v31, 127
    %v33 = vand.u32 2147483647, %v26
    %v34 = vand.u32 %v33, 8388607
    %v35 = vor.u32 %v34, 8388608
    %v36 = vsub.s32 0, %v35
    %v37 = vadd.s32 %v32, 1
    %vm38 = vcmp.gt.s32.totalorder %v37, 0
    %v39 = vsel %vm38, %v37, 0
    %v40 = vshrl.u32 %v39, 5
    %v41 = vand.u32 %v39, 31
    %v42 = vsub.s32 32, %v41
    %v43 = vshrl.u32 683565275, %v42
    %v44 = vshll.u32 683565275, %v41
    %v45 = vshrl.u32 2475754826, %v42
    %v46 = vor.u32 %v44, %v45
    %v47 = vshll.u32 2475754826, %v41
    %v48 = vshrl.u32 2131351028, %v42
    %v49 = vor.u32 %v47, %v48
    %v50 = vshll.u32 2131351028, %v41
    %v51 = vshrl.u32 2102212464, %v42
    %v52 = vor.u32 %v50, %v51
    %v53 = vshll.u32 2102212464, %v41
    %v54 = vshrl.u32 920167782, %v42
    %v55 = vor.u32 %v53, %v54
    %v56 = vshll.u32 920167782, %v41
    %v57 = vshrl.u32 1326507024, %v42
    %v58 = vor.u32 %v56, %v57
    %vm59 = vcmp.lt.s32.totalorder %v40, 1
    %vm60 = vcmp.lt.s32.totalorder %v40, 2
    %vm61 = vcmp.lt.s32.totalorder %v40, 3
    %vm62 = vcmp.lt.s32.totalorder %v40, 4
    %v63 = vsel %vm59, %v43, %v46
    %v64 = vsel %vm62, %v52, 2102212464
    %v65 = vsel %vm61, %v49, %v64
    %v66 = vsel %vm60, %v63, %v65
    %v67 = vsel %vm59, %v46, %v49
    %v68 = vsel %vm62, %v55, 920167782
    %v69 = vsel %vm61, %v52, %v68
    %v70 = vsel %vm60, %v67, %v69
    %v71 = vsel %vm59, %v49, %v52
    %v72 = vsel %vm62, %v58, 1326507024
    %v73 = vsel %vm61, %v55, %v72
    %v74 = vsel %vm60, %v71, %v73
    %v75 = vshll.u32 %v35, 8
    %v76 = vmul.u32.u64.compose %v75, %v74
    %v77 = vextract.low.u32 %v76
    %v78 = vextract.high.u32 %v76
    %v79 = vmul.u32.u64.compose %v75, %v70
    %v80 = vextract.low.u32 %v79
    %v81 = vextract.high.u32 %v79
    %v82 = vmul.u32 %v75, %v66
    %v83 = vadd.s32 %v78, %v80
    %vm84 = vc.u32 %v78, %v80
    %v85 = vadd.s32 %v81, 1
    %v86 = vsel %vm84, %v85, %v81
    %v87 = vadd.s32 %v82, %v86
    %v88 = vadd.s32 %v87, 536870912
    %v89 = vshrl.u32 %v88, 30
    %v90 = vshll.u32 %v89, 30
    %v91 = vsub.s32 %v87, %v90
    %vm92 = vcmp.lt.s32.totalorder %v91, 0
    %v93 = vsub.s32 0, %v91
    %v94 = vsel %vm92, %v93, %v91
    %v95 = vclz %v94
    %v96 = vsub.s32 %v95, 2
    %vm97 = vcmp.gt.s32.totalorder 0, %v96
    %v98 = vsel %vm97, 0, %v96
    %v99 = vsub.s32 32, %v98
    %v100 = vshll.u32 %v91, %v98
    %v101 = vshrl.u32 %v83, %v99
    %v102 = vor.u32 %v100, %v101
    %v103 = vsub.s32 4294967266, %v98
    %v104 = vadd.s32 %v103, 127
    %v105 = vshll.u32 %v104, 23
    %v106 = vor.u32 4788187, %v105
    %v107 = vand.u32 2147483647, %v106
    %v109 = vcvt.s32.f32 %v102
    %v110 = vmul.f32 %v109, %v107
    %v111 = vxor.u32 %v110, 2147483648
    %v112 = vsel %vm29, %v111, %v110
    %v113 = vsub.s32 4, %v89
    %v114 = vsel %vm29, %v113, %v89
    %v115 = vsel %vm28, %v26, %v112
    %v116 = vsel %vm28, 0, %v114
    %v117 = vcosq.f32.pop %v115
    %v118 = vsinq.f32.pop %v115
    %vm119 = vweird.f32 %v26
    %v120 = vadd.s32 %v116, 3
    %v121 = vand.u32 %v120, 3
    %vm122 = vcmp.lt.s32.totalorder %v121, 2
    %vm123 = vcmp.eq.s32.totalorder %v121, 0
    %v124 = vxor.u32 %v118, 2147483648
    %v125 = vsel %vm123, %v117, %v124
    %vm126 = vcmp.eq.s32.totalorder %v121, 2
    %v127 = vxor.u32 %v117, 2147483648
    %v128 = vsel %vm126, %v127, %v118
    %v129 = vsel %vm122, %v125, %v128
    %v130 = vsel %vm119, nan, %v129
    %v131 = vlaneseq
    %vm132 = vcmp.ge.s32.totalorder %v131, 0
    %vm133 = vcmp.lt.s32.totalorder %v131, 128
    %vm134 = vmand %vm132, %vm133
    %135 = vst.msk [vmem:[#allocation5] sm:$0x1] %vm134, %v130
    %v136 = vand.u32 2147483647, %v26
    %vm137 = vcmp.le.f32.partialorder %v136, 0.7853982
    %vm138 = vcmp.lt.s32.totalorder %v26, 0
    %v139 = vand.u32 %v26, 2139095040
    %v140 = vshrl.u32 %v139, 23
    %v141 = vsub.s32 %v140, 127
    %v142 = vand.u32 2147483647, %v26
    %v143 = vand.u32 %v142, 8388607
    %v144 = vor.u32 %v143, 8388608
    %v145 = vsub.s32 0, %v144
    %v146 = vadd.s32 %v141, 1
    %vm147 = vcmp.gt.s32.totalorder %v146, 0
    %v148 = vsel %vm147, %v146, 0
    %v149 = vshrl.u32 %v148, 5
    %v150 = vand.u32 %v148, 31
    %v151 = vsub.s32 32, %v150
    %v152 = vshrl.u32 683565275, %v151
    %v153 = vshll.u32 683565275, %v150
    %v154 = vshrl.u32 2475754826, %v151
    %v155 = vor.u32 %v153, %v154
    %v156 = vshll.u32 2475754826, %v150
    %v157 = vshrl.u32 2131351028, %v151
    %v158 = vor.u32 %v156, %v157
    %v159 = vshll.u32 2131351028, %v150
    %v160 = vshrl.u32 2102212464, %v151
    %v161 = vor.u32 %v159, %v160
    %v162 = vshll.u32 2102212464, %v150
    %v163 = vshrl.u32 920167782, %v151
    %v164 = vor.u32 %v162, %v163
    %v165 = vshll.u32 920167782, %v150
    %v166 = vshrl.u32 1326507024, %v151
    %v167 = vor.u32 %v165, %v166
    %vm168 = vcmp.lt.s32.totalorder %v149, 1
    %vm169 = vcmp.lt.s32.totalorder %v149, 2
    %vm170 = vcmp.lt.s32.totalorder %v149, 3
    %vm171 = vcmp.lt.s32.totalorder %v149, 4
    %v172 = vsel %vm168, %v152, %v155
    %v173 = vsel %vm171, %v161, 2102212464
    %v174 = vsel %vm170, %v158, %v173
    %v175 = vsel %vm169, %v172, %v174
    %v176 = vsel %vm168, %v155, %v158
    %v177 = vsel %vm171, %v164, 920167782
    %v178 = vsel %vm170, %v161, %v177
    %v179 = vsel %vm169, %v176, %v178
    %v180 = vsel %vm168, %v158, %v161
    %v181 = vsel %vm171, %v167, 1326507024
    %v182 = vsel %vm170, %v164, %v181
    %v183 = vsel %vm169, %v180, %v182
    %v184 = vshll.u32 %v144, 8
    %v185 = vmul.u32.u64.compose %v184, %v183
    %v186 = vextract.low.u32 %v185
    %v187 = vextract.high.u32 %v185
    %v188 = vmul.u32.u64.compose %v184, %v179
    %v189 = vextract.low.u32 %v188
    %v190 = vextract.high.u32 %v188
    %v191 = vmul.u32 %v184, %v175
    %v192 = vadd.s32 %v187, %v189
    %vm193 = vc.u32 %v187, %v189
    %v194 = vadd.s32 %v190, 1
    %v195 = vsel %vm193, %v194, %v190
    %v196 = vadd.s32 %v191, %v195
    %v197 = vadd.s32 %v196, 536870912
    %v198 = vshrl.u32 %v197, 30
    %v199 = vshll.u32 %v198, 30
    %v200 = vsub.s32 %v196, %v199
    %vm201 = vcmp.lt.s32.totalorder %v200, 0
    %v202 = vsub.s32 0, %v200
    %v203 = vsel %vm201, %v202, %v200
    %v204 = vclz %v203
    %v205 = vsub.s32 %v204, 2
    %vm206 = vcmp.gt.s32.totalorder 0, %v205
    %v207 = vsel %vm206, 0, %v205
    %v208 = vsub.s32 32, %v207
    %v209 = vshll.u32 %v200, %v207
    %v210 = vshrl.u32 %v192, %v208
    %v211 = vor.u32 %v209, %v210
    %v212 = vsub.s32 4294967266, %v207
    %v213 = vadd.s32 %v212, 127
    %v214 = vshll.u32 %v213, 23
    %v215 = vor.u32 4788187, %v214
    %v216 = vand.u32 2147483647, %v215
    %v218 = vcvt.s32.f32 %v211
    %v219 = vmul.f32 %v218, %v216
    %v220 = vxor.u32 %v219, 2147483648
    %v221 = vsel %vm138, %v220, %v219
    %v222 = vsub.s32 4, %v198
    %v223 = vsel %vm138, %v222, %v198
    %v224 = vsel %vm137, %v26, %v221
    %v225 = vsel %vm137, 0, %v223
    %v226 = vcosq.f32.pop %v224
    %v227 = vsinq.f32.pop %v224
    %vm228 = vweird.f32 %v26
    %v229 = vand.u32 %v225, 3
    %vm230 = vcmp.lt.s32.totalorder %v229, 2
    %vm231 = vcmp.eq.s32.totalorder %v229, 0
    %v232 = vxor.u32 %v227, 2147483648
    %v233 = vsel %vm231, %v226, %v232
    %vm234 = vcmp.eq.s32.totalorder %v229, 2
    %v235 = vxor.u32 %v226, 2147483648
    %v236 = vsel %vm234, %v235, %v227
    %v237 = vsel %vm230, %v233, %v236
    %v238 = vsel %vm228, nan, %v237
    %239 = vst.msk [vmem:[#allocation5 + $0x1] sm:$0x1] %vm134, %v238
    // Predicated region
    $region14: #{tpu_custom_call.1} parent=1 // pred_check
      _
    $region15: #{tpu_custom_call.1} parent=1 // pred_check_branch
      %241 = sbr.rel (0) target = $region17
    $region16: #{tpu_custom_call.1} parent=1 // pred_region
      %s243 = ssub.s32 32, 32
      %244 = vsyncadd [#allocation4], %s243
      %s246 = sshll.u32 [#allocation5], 4
      %s247 = int_to_ptr.vmem [resolvable:$true] %s246
      %249 = dma.vmem_to_hbm [thread:$0]  %s247, 32, %s2, [#allocation4]
    $region17: #{tpu_custom_call.1} parent=1 // pred_fallthru
      _
    // Predicated region
    $region18: #{tpu_custom_call.1} parent=1 // pred_check
      _
    $region19: #{tpu_custom_call.1} parent=1 // pred_check_branch
      %251 = sbr.rel (0) target = $region21
    $region20: #{tpu_custom_call.1} parent=1 // pred_region
      %252 = dma.done [#allocation4], 32
    $region21: #{tpu_custom_call.1} parent=1 // pred_fallthru
      _
    %253 = vsyncpa [#allocation3], 1
    %254 = vsyncpa [#allocation4], 1

</llo_original>
